<compile_context>
chip_gen: v7x
topology: tpu7x:2x2x1
jax: 0.10.0
libtpu: 0.0.40
codegen_flags: <defaults>
</compile_context>

<pallas_src>
import functools

import jax
import jax.numpy as jnp
from jax.experimental import pallas as pl

HEAD_PAD = 128  # pad each K/Q/V segment to one full 128-lane vreg width


def _attn_head_kernel(x_ref, w_ref, o_ref, *, batch, seq, head_pad):
    # x_ref: (B*T, C)      bf16
    # w_ref: (C, 3*HP)     bf16, fused [W_k | W_q * H**-0.5 | W_v], zero-padded
    # o_ref: (B, T, HP)    f32, lane-dense (HP = 128)
    B, T, HP = batch, seq, head_pad

    # Fused QKV projection: one bf16 MXU matmul over all batches/rows, f32 acc.
    kqv = jnp.dot(x_ref[...], w_ref[...],
                  preferred_element_type=jnp.float32)        # (B*T, 3*HP) f32
    kqv = kqv.reshape(B, T, 3 * HP)

    # Segment slices start on 128-lane boundaries -> free views, no XLU work.
    k = kqv[:, :, 0 * HP:1 * HP]       # (B, T, HP)
    q = kqv[:, :, 1 * HP:2 * HP]       # (B, T, HP)  (1/sqrt(H) folded into W_q)
    v = kqv[:, :, 2 * HP:3 * HP]       # (B, T, HP)

    # Scores: batched contraction over the (padded) head dim; padded columns
    # are zero in both operands so they contribute nothing.  bf16 in, f32 acc.
    wei = jnp.einsum('bqd,bkd->bqk',
                     q.astype(jnp.bfloat16), k.astype(jnp.bfloat16),
                     preferred_element_type=jnp.float32)      # (B, T, T)

    # Causal mask from (T, T) iotas, broadcast over batch.
    row = jax.lax.broadcasted_iota(jnp.int32, (T, T), 0)
    col = jax.lax.broadcasted_iota(jnp.int32, (T, T), 1)
    causal = (col <= row)[None, :, :]                         # (1, T, T)
    wei = jnp.where(causal, wei, -jnp.inf)

    # Numerically stable softmax over the last axis, kept in f32.
    wei = wei - jnp.max(wei, axis=-1, keepdims=True)
    p = jnp.exp(wei)
    p = p * pl.reciprocal(jnp.sum(p, axis=-1, keepdims=True), approx=True)

    # TODO(synk): nn.Dropout on attention weights is identity in eval mode;
    # training-mode dropout (pltpu.prng_seed/prng_random_bits mask) not done.

    # Weighted sum of values: bf16 operands, f32 accumulation.
    out = jnp.einsum('bqk,bkd->bqd',
                     p.astype(jnp.bfloat16), v.astype(jnp.bfloat16),
                     preferred_element_type=jnp.float32)      # (B, T, HP)

    o_ref[...] = out.astype(o_ref.dtype)   # full 128-lane unmasked store


def init_attention_head_weights(key, n_embd, head_size, dtype=jnp.float32):
    """Deterministic Linear(bias=False) weights, stored as (C, H)."""
    kk, kq, kv = jax.random.split(key, 3)
    w_key = jax.random.normal(kk, (n_embd, head_size), dtype=dtype) * 0.1
    w_query = jax.random.normal(kq, (n_embd, head_size), dtype=dtype) * 0.1
    w_value = jax.random.normal(kv, (n_embd, head_size), dtype=dtype) * 0.1
    return w_key, w_query, w_value


def fuse_attention_weights(w_key, w_query, w_value, head_pad=HEAD_PAD):
    """One-time init transform.

    Folds 1/sqrt(H) into W_q, zero-pads each segment to `head_pad` lanes so
    all segments are 128-lane aligned, concatenates to (C, 3*head_pad), and
    stores in bf16 for native MXU consumption.
    """
    C, H = w_key.shape
    assert H <= head_pad
    scale = H ** (-0.5)

    def pad(w):
        return jnp.pad(w, ((0, 0), (0, head_pad - H)))

    fused = jnp.concatenate([pad(w_key), pad(w_query * scale), pad(w_value)],
                            axis=1)
    return fused.astype(jnp.bfloat16)


@functools.partial(jax.jit, static_argnames=("head_size",))
def attention_head(x, w_kqv, head_size):
    """x: (B, T, C) f32; w_kqv: (C, 3*HP) bf16 fused+padded -> (B, T, H) f32."""
    B, T, C = x.shape
    HP = w_kqv.shape[1] // 3

    # Free reshape + cast in the wrapper (XLA side), not inside the kernel.
    x2d = x.reshape(B * T, C).astype(jnp.bfloat16)

    kernel = functools.partial(_attn_head_kernel, batch=B, seq=T, head_pad=HP)
    cost = pl.CostEstimate(
        flops=2 * B * T * C * 3 * HP          # fused projection
        + 2 * B * T * T * HP                  # q @ k^T
        + 2 * B * T * T * HP,                 # p @ v
        transcendentals=B * T * T,            # exp
        bytes_accessed=x2d.size * 2 + w_kqv.size * 2 + B * T * HP * 4,
    )

    out_pad = pl.pallas_call(
        kernel,
        out_shape=jax.ShapeDtypeStruct((B, T, HP), x.dtype),
        # grid=() : single invocation, whole (tiny) arrays resident in VMEM.
        in_specs=[
            pl.BlockSpec((B * T, C), lambda: (0, 0)),       # x, flattened
            pl.BlockSpec((C, 3 * HP), lambda: (0, 0)),      # fused W_kqv
        ],
        out_specs=pl.BlockSpec((B, T, HP), lambda: (0, 0, 0)),
        cost_estimate=cost,
    )(x2d, w_kqv)

    # Drop the inert zero-padded head columns outside the kernel.
    return out_pad[:, :, :head_size]


def _reference(x, w_key, w_query, w_value):
    """Pure-JAX f32 reference matching the PyTorch forward (eval mode)."""
    H = w_key.shape[1]
    k = x @ w_key
    q = x @ w_query
    v = x @ w_value
    wei = (q @ jnp.swapaxes(k, -2, -1)) * H ** (-0.5)
    T = x.shape[1]
    tril = jnp.tril(jnp.ones((T, T)))
    wei = jnp.where(tril == 0, -jnp.inf, wei)
    wei = jax.nn.softmax(wei, axis=-1)
    return wei @ v


if __name__ == "__main__":
    # Module hyperparameters (small, consistent with the forward pass).
    n_embd = 32      # C
    block_size = 8   # max T (tril buffer size)
    head_size = 16   # H
    B, T = 2, 8      # T == block_size here

    key = jax.random.PRNGKey(0)
    kx, kw = jax.random.split(key)

    x = jax.random.normal(kx, (B, T, n_embd), dtype=jnp.float32)
    w_key_, w_query, w_value = init_attention_head_weights(kw, n_embd, head_size)

    # One-time "module init": fuse+pad QKV weights, fold the 1/sqrt(H) scale,
    # store in bf16.
    w_kqv = fuse_attention_weights(w_key_, w_query, w_value)

    out = attention_head(x, w_kqv, head_size)
    out = jax.block_until_ready(out)

    ref = _reference(x, w_key_, w_query, w_value)
    assert out.shape == (B, T, head_size)
    # bf16 MXU operands + approx softmax reciprocal -> loosened tolerance vs
    # the pure-f32 reference.
    assert jnp.allclose(out, ref, atol=3e-2, rtol=3e-2), "mismatch vs reference"

    print("KERNEL_OK")
</pallas_src>

<mosaic_0001>
module attributes {stable_mosaic.version = 11 : i64} {
  func.func @_attn_head_kernel(%arg0: memref<16x32xbf16, #tpu.memory_space<vmem>>, %arg1: memref<32x384xbf16, #tpu.memory_space<vmem>>, %arg2: memref<2x8x128xf32, #tpu.memory_space<vmem>>) attributes {dimension_semantics = [], scalar_prefetch = 0 : i64, scratch_operands = 0 : i64, tpu.core_type = #tpu.core_type<tc>} {
    %c0 = arith.constant 0 : index
    %c0_0 = arith.constant 0 : index
    %0 = vector.load %arg0[%c0, %c0_0] : memref<16x32xbf16, #tpu.memory_space<vmem>>, vector<16x32xbf16>
    %c0_1 = arith.constant 0 : index
    %c0_2 = arith.constant 0 : index
    %1 = vector.load %arg1[%c0_1, %c0_2] : memref<32x384xbf16, #tpu.memory_space<vmem>>, vector<32x384xbf16>
    %cst = arith.constant dense<0.000000e+00> : vector<16x384xf32>
    %2 = tpu.matmul %0, %1, %cst {dimension_numbers = #tpu.dot_dimension_numbers<[1], [0], [0], [1], [0, 0, 1, 1], [], []>} : vector<16x32xbf16>, vector<32x384xbf16>, vector<16x384xf32> -> vector<16x384xf32>
    %3 = vector.shape_cast %2 : vector<16x384xf32> to vector<2x8x384xf32>
    %4 = vector.extract_strided_slice %3 {offsets = [0, 0, 0], sizes = [2, 8, 128], strides = [1, 1, 1]} : vector<2x8x384xf32> to vector<2x8x128xf32>
    %5 = vector.extract_strided_slice %3 {offsets = [0, 0, 128], sizes = [2, 8, 128], strides = [1, 1, 1]} : vector<2x8x384xf32> to vector<2x8x128xf32>
    %6 = vector.extract_strided_slice %3 {offsets = [0, 0, 256], sizes = [2, 8, 128], strides = [1, 1, 1]} : vector<2x8x384xf32> to vector<2x8x128xf32>
    %7 = arith.truncf %5 : vector<2x8x128xf32> to vector<2x8x128xbf16>
    %8 = arith.truncf %4 : vector<2x8x128xf32> to vector<2x8x128xbf16>
    "tpu.trace_start"() <{level = 10 : i32, message = "bqd,bkd->bqk"}> : () -> ()
    %cst_3 = arith.constant dense<0.000000e+00> : vector<2x8x8xf32>
    %9 = tpu.matmul %7, %8, %cst_3 {dimension_numbers = #tpu.dot_dimension_numbers<[2], [2], [1], [1], [0, 0, 0, 1, 1, 1], [0], [0]>} : vector<2x8x128xbf16>, vector<2x8x128xbf16>, vector<2x8x8xf32> -> vector<2x8x8xf32>
    "tpu.trace_stop"() : () -> ()
    %10 = tpu.iota {dimensions = array<i32: 0>} : vector<8x8xi32>
    %11 = tpu.iota {dimensions = array<i32: 1>} : vector<8x8xi32>
    %12 = arith.cmpi sle, %11, %10 : vector<8x8xi32>
    %13 = vector.shape_cast %12 : vector<8x8xi1> to vector<1x8x8xi1>
    %cst_4 = arith.constant 0xFF800000 : f32
    %14 = vector.shape_cast %13 : vector<1x8x8xi1> to vector<1x8x8xi1>
    %15 = vector.broadcast %14 : vector<1x8x8xi1> to vector<2x8x8xi1>
    %16 = vector.broadcast %cst_4 : f32 to vector<2x8x8xf32>
    %17 = arith.select %15, %9, %16 : vector<2x8x8xi1>, vector<2x8x8xf32>
    %cst_5 = arith.constant dense<0xFF800000> : vector<2x8xf32>
    %18 = vector.multi_reduction <maximumf>, %17, %cst_5 [2] : vector<2x8x8xf32> to vector<2x8xf32>
    %19 = vector.shape_cast %18 : vector<2x8xf32> to vector<2x8x1xf32>
    %20 = vector.broadcast %19 : vector<2x8x1xf32> to vector<2x8x8xf32>
    %21 = arith.subf %17, %20 : vector<2x8x8xf32>
    %22 = math.exp %21 : vector<2x8x8xf32>
    %cst_6 = arith.constant dense<0.000000e+00> : vector<2x8xf32>
    %23 = vector.multi_reduction <add>, %22, %cst_6 [2] : vector<2x8x8xf32> to vector<2x8xf32>
    %24 = vector.shape_cast %23 : vector<2x8xf32> to vector<2x8x1xf32>
    %25 = tpu.reciprocal %24 {approx = true} : vector<2x8x1xf32> -> vector<2x8x1xf32>
    %26 = vector.broadcast %25 : vector<2x8x1xf32> to vector<2x8x8xf32>
    %27 = arith.mulf %22, %26 : vector<2x8x8xf32>
    %28 = arith.truncf %27 : vector<2x8x8xf32> to vector<2x8x8xbf16>
    %29 = arith.truncf %6 : vector<2x8x128xf32> to vector<2x8x128xbf16>
    "tpu.trace_start"() <{level = 10 : i32, message = "bqk,bkd->bqd"}> : () -> ()
    %cst_7 = arith.constant dense<0.000000e+00> : vector<2x8x128xf32>
    %30 = tpu.matmul %28, %29, %cst_7 {dimension_numbers = #tpu.dot_dimension_numbers<[2], [1], [1], [2], [0, 0, 0, 1, 1, 2], [0], [0]>} : vector<2x8x8xbf16>, vector<2x8x128xbf16>, vector<2x8x128xf32> -> vector<2x8x128xf32>
    "tpu.trace_stop"() : () -> ()
    %c0_8 = arith.constant 0 : index
    %c0_9 = arith.constant 0 : index
    %c0_10 = arith.constant 0 : index
    %31 = vector.load %arg2[%c0_8, %c0_9, %c0_10] : memref<2x8x128xf32, #tpu.memory_space<vmem>>, vector<2x8x128xf32>
    tpu.vector_store %arg2[%c0_8, %c0_9, %c0_10], %30 {strides = array<i32>} : memref<2x8x128xf32, #tpu.memory_space<vmem>>, vector<2x8x128xf32>,
    return
  }
}

</mosaic_0001>

<llo_original>
// kernel: attention_head.1
$region0: #{attention_head.1}
  #allocation0 [shape = 'u32[]', space=smem, size = 0x4, offset = 0x4, fixed_abs, tag = 'smem constant byte address 0x4 - core index']
  #allocation1 [shape = 'u32[144,128]{1,0:T(1,128)}', space=vmem, size = 0x12000, scoped, tag = 'internal scratch']
  %s0 = inlined_call_operand.vmem [shape: bf16[16,32], index: 0, kind: input, shape index: {}]
  %s1 = inlined_call_operand.hbm [shape: bf16[32,384], index: 1, kind: input, shape index: {}]
  %s2 = inlined_call_operand.hbm [shape: f32[2,8,128], index: 2, kind: output, shape index: {}]
  %s3 = sld [smem:[#allocation0]]
  $region22: #{attention_head.1} parent=0
    _
  %s5 = ssub.s32 1, %s3
  %s6 = scalar_select 0, %s5, %s3
  $region1: #{attention_head.1} parent=0
    #allocation2 [shape = 'u8[24576]{0}', space=vmem, size = 0x6000, scoped, tag = 'input window, operand 1, single buffered']
    #allocation3 [shape = 's32[1]{0}', space=sflag, size = 0x4, scoped, tag = 'scoped memory for attention_head.1']
    #allocation4 [shape = 's32[1]{0}', space=sflag, size = 0x4, scoped, tag = 'scoped memory for attention_head.1']
    #allocation5 [shape = 'u8[8192]{0}', space=vmem, size = 0x2000, scoped, tag = 'output window, operand 0, single buffered']
    %7 = vsyncpa [#allocation3], 0
    %8 = vsyncpa [#allocation4], 0
    // Predicated region
    $region2: #{attention_head.1} parent=1 // pred_check
      _
    $region3: #{attention_head.1} parent=1 // pred_check_branch
      %10 = sbr.rel (0) target = $region5
    $region4: #{attention_head.1} parent=1 // pred_region
      _
    $region5: #{attention_head.1} parent=1 // pred_fallthru
      _
    // Predicated region
    $region6: #{attention_head.1} parent=1 // pred_check
      _
    $region7: #{attention_head.1} parent=1 // pred_check_branch
      %12 = sbr.rel (0) target = $region9
    $region8: #{attention_head.1} parent=1 // pred_region
      %s14 = ssub.s32 768, 768
      %15 = vsyncadd [#allocation3], %s14
      %s16 = sshll.u32 [#allocation2], 4
      %s17 = int_to_ptr.vmem [resolvable:$true] %s16
      %22 = dma.hbm_to_vmem [thread:$0]  %s1, 768, %s17, [#allocation3], 192, 192, 12
    $region9: #{attention_head.1} parent=1 // pred_fallthru
      _
    // Predicated region
    $region10: #{attention_head.1} parent=1 // pred_check
      _
    $region11: #{attention_head.1} parent=1 // pred_check_branch
      %24 = sbr.rel (0) target = $region13
    $region12: #{attention_head.1} parent=1 // pred_region
      %25 = dma.done [#allocation3], 768
    $region13: #{attention_head.1} parent=1 // pred_fallthru
      _
    %v27 = vld [vmem:[%s0] sm:$0xf]
    %v28 = vld [vmem:[%s0 + $0x4] sm:$0xf]
    %v29 = vld [vmem:[#allocation2] sm:$0xff]
    %v30 = vld [vmem:[#allocation2 + $0x8] sm:$0xf]
    %v31 = vld [vmem:[#allocation2 + $0xc] sm:$0xff]
    %v32 = vld [vmem:[#allocation2 + $0x14] sm:$0xf]
    %v33 = vld [vmem:[#allocation2 + $0x18] sm:$0xff]
    %v34 = vld [vmem:[#allocation2 + $0x20] sm:$0xf]
    %v35 = vld [vmem:[#allocation2 + $0x24] sm:$0xff]
    %v36 = vld [vmem:[#allocation2 + $0x2c] sm:$0xf]
    %v39 = vunpack.c.l.b16 %v27
    %v40 = vunpack.c.l.b16 %v28
    %v41 = vpack.c.b16 %v40, %v39
    %v50 = vunpack.c.l.b16 %v29
    %v51 = vunpack.c.h.b16 %v29
    %v52 = vunpack.c.l.b16 %v30
    %v53 = vunpack.c.l.b16 %v31
    %v54 = vunpack.c.h.b16 %v31
    %v55 = vunpack.c.l.b16 %v32
    %v56 = vunpack.c.l.b16 %v33
    %v57 = vunpack.c.h.b16 %v33
    %v58 = vunpack.c.l.b16 %v34
    %v59 = vunpack.c.l.b16 %v35
    %v60 = vunpack.c.h.b16 %v35
    %v61 = vunpack.c.l.b16 %v36
    %v62 = vpack.c.b16 %v53, %v50
    %v63 = vpack.c.b16 %v54, %v51
    %v64 = vpack.c.b16 %v55, %v52
    %v65 = vpack.c.b16 %v59, %v56
    %v66 = vpack.c.b16 %v60, %v57
    %v67 = vpack.c.b16 %v61, %v58
    %vm74 = vcmask 261120
    %v76 = vsel %vm74, %v41, 0
    %78 = vmatprep.subr.bf16.mxu0 %v63
    %79 = vmatpush1.bf16.msra.mxu0 %v62
    %80 = vmatprep.subr.bf16.mxu0 %v66
    %81 = vmatpush1.bf16.msra.mxu0 %v65
    %82 = vmatprep.subr.bf16.mxu0 0
    %83 = vmatpush1.bf16.msra.mxu0 0
    %84 = vmatprep.subr.bf16.mxu0 0
    %85 = vmatpush1.bf16.msra.mxu0 0
    %86 = vmatprep.subr.bf16.mxu0 0
    %87 = vmatpush1.bf16.msra.mxu0 0
    %88 = vmatprep.subr.bf16.mxu0 0
    %89 = vmatpush1.bf16.msra.mxu0 0
    %90 = vmatprep.subr.bf16.mxu0 0
    %91 = vmatpush1.bf16.msra.mxu0 0
    %92 = vmatprep.subr.bf16.mxu0 0
    %93 = vmatpush1.bf16.msra.mxu0 0
    %94 = vmatprep.subr.bf16.mxu0 0
    %95 = vmatpush1.bf16.msra.mxu0 0
    %96 = vmatprep.subr.bf16.mxu0 0
    %97 = vmatpush1.bf16.msra.mxu0 0
    %98 = vmatprep.subr.bf16.mxu0 0
    %99 = vmatpush1.bf16.msra.mxu0 0
    %100 = vmatprep.subr.bf16.mxu0 0
    %101 = vmatpush1.bf16.msra.mxu0 0
    %102 = vmatprep.subr.bf16.mxu0 0
    %103 = vmatpush1.bf16.msra.mxu0 0
    %104 = vmatprep.subr.bf16.mxu0 0
    %105 = vmatpush1.bf16.msra.mxu0 0
    %106 = vmatprep.subr.bf16.mxu0 0
    %107 = vmatpush1.bf16.msra.mxu0 0
    %108 = vmatprep.subr.bf16.mxu0 0
    %109 = vmatpush1.bf16.msra.mxu0 0
    %110 = vmatprep.mubr.bf16.mxu0 0
    %111 = vmatmul.mubr.bf16.gmra.mrb[0].mxu0 %v76
    %v112 = vpop.f32.mrb[0].mxu0
    %v113 = vadd.f32 0.0, %v112
    %v114 = vpop.f32.mrb[0].mxu0
    %v115 = vadd.f32 0.0, %v114
    %v116 = vpop.f32.mrb[0].mxu0
    %v117 = vadd.f32 0.0, %v116
    %v118 = vpop.f32.mrb[0].mxu0
    %v119 = vadd.f32 0.0, %v118
    %120 = vdwg.mxu0
    %121 = vmatprep.subr.bf16.mxu0 0
    %122 = vmatpush1.bf16.msra.mxu0 %v64
    %123 = vmatprep.subr.bf16.mxu0 0
    %124 = vmatpush1.bf16.msra.mxu0 %v67
    %125 = vmatprep.subr.bf16.mxu0 0
    %126 = vmatpush1.bf16.msra.mxu0 0
    %127 = vmatprep.subr.bf16.mxu0 0
    %128 = vmatpush1.bf16.msra.mxu0 0
    %129 = vmatprep.subr.bf16.mxu0 0
    %130 = vmatpush1.bf16.msra.mxu0 0
    %131 = vmatprep.subr.bf16.mxu0 0
    %132 = vmatpush1.bf16.msra.mxu0 0
    %133 = vmatprep.subr.bf16.mxu0 0
    %134 = vmatpush1.bf16.msra.mxu0 0
    %135 = vmatprep.subr.bf16.mxu0 0
    %136 = vmatpush1.bf16.msra.mxu0 0
    %137 = vmatprep.subr.bf16.mxu0 0
    %138 = vmatpush1.bf16.msra.mxu0 0
    %139 = vmatprep.subr.bf16.mxu0 0
    %140 = vmatpush1.bf16.msra.mxu0 0
    %141 = vmatprep.subr.bf16.mxu0 0
    %142 = vmatpush1.bf16.msra.mxu0 0
    %143 = vmatprep.subr.bf16.mxu0 0
    %144 = vmatpush1.bf16.msra.mxu0 0
    %145 = vmatprep.subr.bf16.mxu0 0
    %146 = vmatpush1.bf16.msra.mxu0 0
    %147 = vmatprep.subr.bf16.mxu0 0
    %148 = vmatpush1.bf16.msra.mxu0 0
    %149 = vmatprep.subr.bf16.mxu0 0
    %150 = vmatpush1.bf16.msra.mxu0 0
    %151 = vmatprep.subr.bf16.mxu0 0
    %152 = vmatpush1.bf16.msra.mxu0 0
    %153 = vmatprep.mubr.bf16.mxu0 0
    %154 = vmatmul.mubr.bf16.gmra.mrb[0].mxu0 %v76
    %v155 = vpop.f32.mrb[0].mxu0
    %v156 = vadd.f32 0.0, %v155
    %v157 = vpop.f32.mrb[0].mxu0
    %v158 = vpop.f32.mrb[0].mxu0
    %v159 = vadd.f32 0.0, %v158
    %v160 = vpop.f32.mrb[0].mxu0
    %161 = vdwg.mxu0
    %v162 = vpack.c.bf16 %v115, %v115
    %v163 = vpack.c.bf16 %v119, %v119
    %v164 = vpack.c.bf16 %v113, %v113
    %v165 = vpack.c.bf16 %v117, %v117
    %166 = vmatprep.subr.bf16.mxu0 0
    %167 = vmatpush1.bf16.xpose.msra.mxu0 %v164
    %168 = vmatprep.subr.bf16.mxu0 0
    %169 = vmatpush1.bf16.xpose.msra.mxu0 0
    %170 = vmatprep.subr.bf16.mxu0 0
    %171 = vmatpush1.bf16.xpose.msra.mxu0 0
    %172 = vmatprep.subr.bf16.mxu0 0
    %173 = vmatpush1.bf16.xpose.msra.mxu0 0
    %174 = vmatprep.subr.bf16.mxu0 0
    %175 = vmatpush1.bf16.xpose.msra.mxu0 0
    %176 = vmatprep.subr.bf16.mxu0 0
    %177 = vmatpush1.bf16.xpose.msra.mxu0 0
    %178 = vmatprep.subr.bf16.mxu0 0
    %179 = vmatpush1.bf16.xpose.msra.mxu0 0
    %180 = vmatprep.subr.bf16.mxu0 0
    %181 = vmatpush1.bf16.xpose.msra.mxu0 0
    %182 = vmatprep.subr.bf16.mxu0 0
    %183 = vmatpush1.bf16.xpose.msra.mxu0 0
    %184 = vmatprep.subr.bf16.mxu0 0
    %185 = vmatpush1.bf16.xpose.msra.mxu0 0
    %186 = vmatprep.subr.bf16.mxu0 0
    %187 = vmatpush1.bf16.xpose.msra.mxu0 0
    %188 = vmatprep.subr.bf16.mxu0 0
    %189 = vmatpush1.bf16.xpose.msra.mxu0 0
    %190 = vmatprep.subr.bf16.mxu0 0
    %191 = vmatpush1.bf16.xpose.msra.mxu0 0
    %192 = vmatprep.subr.bf16.mxu0 0
    %193 = vmatpush1.bf16.xpose.msra.mxu0 0
    %194 = vmatprep.subr.bf16.mxu0 0
    %195 = vmatpush1.bf16.xpose.msra.mxu0 0
    %196 = vmatprep.subr.bf16.mxu0 0
    %197 = vmatpush1.bf16.xpose.msra.mxu0 0
    %198 = vmatprep.mubr.bf16.mxu0 0
    %199 = vmatmul.mubr.bf16.gmra.mrb[0].mxu0 %v162
    %v200 = vpop.f32.mrb[0].mxu0
    %v201 = vadd.f32 0.0, %v200
    %v202 = vpop.f32.mrb[0].mxu0
    %v203 = vpop.f32.mrb[0].mxu0
    %v204 = vpop.f32.mrb[0].mxu0
    %205 = vdwg.mxu0
    %206 = vmatprep.subr.bf16.mxu0 0
    %207 = vmatpush1.bf16.xpose.msra.mxu0 %v165
    %208 = vmatprep.subr.bf16.mxu0 0
    %209 = vmatpush1.bf16.xpose.msra.mxu0 0
    %210 = vmatprep.subr.bf16.mxu0 0
    %211 = vmatpush1.bf16.xpose.msra.mxu0 0
    %212 = vmatprep.subr.bf16.mxu0 0
    %213 = vmatpush1.bf16.xpose.msra.mxu0 0
    %214 = vmatprep.subr.bf16.mxu0 0
    %215 = vmatpush1.bf16.xpose.msra.mxu0 0
    %216 = vmatprep.subr.bf16.mxu0 0
    %217 = vmatpush1.bf16.xpose.msra.mxu0 0
    %218 = vmatprep.subr.bf16.mxu0 0
    %219 = vmatpush1.bf16.xpose.msra.mxu0 0
    %220 = vmatprep.subr.bf16.mxu0 0
    %221 = vmatpush1.bf16.xpose.msra.mxu0 0
    %222 = vmatprep.subr.bf16.mxu0 0
    %223 = vmatpush1.bf16.xpose.msra.mxu0 0
    %224 = vmatprep.subr.bf16.mxu0 0
    %225 = vmatpush1.bf16.xpose.msra.mxu0 0
    %226 = vmatprep.subr.bf16.mxu0 0
    %227 = vmatpush1.bf16.xpose.msra.mxu0 0
    %228 = vmatprep.subr.bf16.mxu0 0
    %229 = vmatpush1.bf16.xpose.msra.mxu0 0
    %230 = vmatprep.subr.bf16.mxu0 0
    %231 = vmatpush1.bf16.xpose.msra.mxu0 0
    %232 = vmatprep.subr.bf16.mxu0 0
    %233 = vmatpush1.bf16.xpose.msra.mxu0 0
    %234 = vmatprep.subr.bf16.mxu0 0
    %235 = vmatpush1.bf16.xpose.msra.mxu0 0
    %236 = vmatprep.subr.bf16.mxu0 0
    %237 = vmatpush1.bf16.xpose.msra.mxu0 0
    %238 = vmatprep.mubr.bf16.mxu0 0
    %239 = vmatmul.mubr.bf16.gmra.mrb[0].mxu0 %v163
    %v240 = vpop.f32.mrb[0].mxu0
    %v241 = vadd.f32 0.0, %v240
    %v242 = vpop.f32.mrb[0].mxu0
    %v243 = vpop.f32.mrb[0].mxu0
    %v244 = vpop.f32.mrb[0].mxu0
    %245 = vdwg.mxu0
    %v246 = vlaneseq
    %v247 = vshrl.u32 %v246, 7
    %v248 = vlaneseq
    %v249 = vand.u32 %v248, 127
    %vm250 = vcmp.le.s32.totalorder %v249, %v247
    %v251 = vsel %vm250, 1, 0
    %vm252 = vcmp.eq.s32.totalorder %v251, 1
    %v253 = vsel %vm252, %v201, -inf
    %v254 = vsel %vm252, %v241, -inf
    %vm255 = vcmask 64512
    %v256 = vsel %vm255, %v253, -inf
    %257 = vmax.xlane.f32.xlu0 %v256
    %v258 = vpop.xlane.xlu0 %257
    %v259 = vsel %vm255, %v254, -inf
    %260 = vmax.xlane.f32.xlu0 %v259
    %v261 = vpop.xlane.xlu0 %260
    %v262 = vsub.f32 %v253, %v258
    %v263 = vsub.f32 %v254, %v261
    %v264 = vmul.f32 %v262, 1.442695
    %v265 = vpow.pop %v264
    %v266 = vmul.f32 %v263, 1.442695
    %v267 = vpow.pop %v266
    %v268 = vsel %vm255, %v265, 0.0
    %269 = vadd.xlane.f32.xlu0 %v268
    %v270 = vpop.xlane.xlu0 %269
    %v271 = vsel %vm255, %v267, 0.0
    %272 = vadd.xlane.f32.xlu0 %v271
    %v273 = vpop.xlane.xlu0 %272
    %v274 = vrcp.pop %v270
    %v275 = vrcp.pop %v273
    %v276 = vmul.f32 %v265, %v274
    %v277 = vmul.f32 %v267, %v275
    %v278 = vpack.c.bf16 %v276, %v276
    %v279 = vpack.c.bf16 %v277, %v277
    %v280 = vpack.c.bf16 %v156, %v156
    %v281 = vpack.c.bf16 %v159, %v159
    %v283 = vsel %vm255, %v278, 0
    %vm285 = vcmask 1043456
    %v287 = vsel %vm285, %v280, 0
    %289 = vmatprep.subr.bf16.mxu0 0
    %290 = vmatpush1.bf16.msra.mxu0 %v287
    %291 = vmatprep.subr.bf16.mxu0 0
    %292 = vmatpush1.bf16.msra.mxu0 0
    %293 = vmatprep.subr.bf16.mxu0 0
    %294 = vmatpush1.bf16.msra.mxu0 0
    %295 = vmatprep.subr.bf16.mxu0 0
    %296 = vmatpush1.bf16.msra.mxu0 0
    %297 = vmatprep.subr.bf16.mxu0 0
    %298 = vmatpush1.bf16.msra.mxu0 0
    %299 = vmatprep.subr.bf16.mxu0 0
    %300 = vmatpush1.bf16.msra.mxu0 0
    %301 = vmatprep.subr.bf16.mxu0 0
    %302 = vmatpush1.bf16.msra.mxu0 0
    %303 = vmatprep.subr.bf16.mxu0 0
    %304 = vmatpush1.bf16.msra.mxu0 0
    %305 = vmatprep.subr.bf16.mxu0 0
    %306 = vmatpush1.bf16.msra.mxu0 0
    %307 = vmatprep.subr.bf16.mxu0 0
    %308 = vmatpush1.bf16.msra.mxu0 0
    %309 = vmatprep.subr.bf16.mxu0 0
    %310 = vmatpush1.bf16.msra.mxu0 0
    %311 = vmatprep.subr.bf16.mxu0 0
    %312 = vmatpush1.bf16.msra.mxu0 0
    %313 = vmatprep.subr.bf16.mxu0 0
    %314 = vmatpush1.bf16.msra.mxu0 0
    %315 = vmatprep.subr.bf16.mxu0 0
    %316 = vmatpush1.bf16.msra.mxu0 0
    %317 = vmatprep.subr.bf16.mxu0 0
    %318 = vmatpush1.bf16.msra.mxu0 0
    %319 = vmatprep.subr.bf16.mxu0 0
    %320 = vmatpush1.bf16.msra.mxu0 0
    %321 = vmatprep.mubr.bf16.mxu0 0
    %322 = vmatmul.mubr.bf16.gmra.mrb[0].mxu0 %v283
    %v323 = vpop.f32.mrb[0].mxu0
    %v324 = vadd.f32 0.0, %v323
    %v325 = vpop.f32.mrb[0].mxu0
    %v326 = vpop.f32.mrb[0].mxu0
    %v327 = vpop.f32.mrb[0].mxu0
    %328 = vdwg.mxu0
    %v330 = vsel %vm255, %v279, 0
    %v333 = vsel %vm285, %v281, 0
    %335 = vmatprep.subr.bf16.mxu0 0
    %336 = vmatpush1.bf16.msra.mxu0 %v333
    %337 = vmatprep.subr.bf16.mxu0 0
    %338 = vmatpush1.bf16.msra.mxu0 0
    %339 = vmatprep.subr.bf16.mxu0 0
    %340 = vmatpush1.bf16.msra.mxu0 0
    %341 = vmatprep.subr.bf16.mxu0 0
    %342 = vmatpush1.bf16.msra.mxu0 0
    %343 = vmatprep.subr.bf16.mxu0 0
    %344 = vmatpush1.bf16.msra.mxu0 0
    %345 = vmatprep.subr.bf16.mxu0 0
    %346 = vmatpush1.bf16.msra.mxu0 0
    %347 = vmatprep.subr.bf16.mxu0 0
    %348 = vmatpush1.bf16.msra.mxu0 0
    %349 = vmatprep.subr.bf16.mxu0 0
    %350 = vmatpush1.bf16.msra.mxu0 0
    %351 = vmatprep.subr.bf16.mxu0 0
    %352 = vmatpush1.bf16.msra.mxu0 0
    %353 = vmatprep.subr.bf16.mxu0 0
    %354 = vmatpush1.bf16.msra.mxu0 0
    %355 = vmatprep.subr.bf16.mxu0 0
    %356 = vmatpush1.bf16.msra.mxu0 0
    %357 = vmatprep.subr.bf16.mxu0 0
    %358 = vmatpush1.bf16.msra.mxu0 0
    %359 = vmatprep.subr.bf16.mxu0 0
    %360 = vmatpush1.bf16.msra.mxu0 0
    %361 = vmatprep.subr.bf16.mxu0 0
    %362 = vmatpush1.bf16.msra.mxu0 0
    %363 = vmatprep.subr.bf16.mxu0 0
    %364 = vmatpush1.bf16.msra.mxu0 0
    %365 = vmatprep.subr.bf16.mxu0 0
    %366 = vmatpush1.bf16.msra.mxu0 0
    %367 = vmatprep.mubr.bf16.mxu0 0
    %368 = vmatmul.mubr.bf16.gmra.mrb[0].mxu0 %v330
    %v369 = vpop.f32.mrb[0].mxu0
    %v370 = vadd.f32 0.0, %v369
    %v371 = vpop.f32.mrb[0].mxu0
    %v372 = vpop.f32.mrb[0].mxu0
    %v373 = vpop.f32.mrb[0].mxu0
    %374 = vdwg.mxu0
    %375 = vst [vmem:[#allocation5] sm:$0xff] %v324
    %376 = vst [vmem:[#allocation5 + $0x8] sm:$0xff] %v370
    // Predicated region
    $region14: #{attention_head.1} parent=1 // pred_check
      _
    $region15: #{attention_head.1} parent=1 // pred_check_branch
      %378 = sbr.rel (0) target = $region17
    $region16: #{attention_head.1} parent=1 // pred_region
      %s380 = ssub.s32 256, 256
      %381 = vsyncadd [#allocation4], %s380
      %s382 = sshll.u32 [#allocation5], 4
      %s383 = int_to_ptr.vmem [resolvable:$true] %s382
      %388 = dma.vmem_to_hbm [thread:$0]  %s383, 256, %s2, [#allocation4], 128, 128, 8
    $region17: #{attention_head.1} parent=1 // pred_fallthru
      _
    // Predicated region
    $region18: #{attention_head.1} parent=1 // pred_check
      _
    $region19: #{attention_head.1} parent=1 // pred_check_branch
      %390 = sbr.rel (0) target = $region21
    $region20: #{attention_head.1} parent=1 // pred_region
      %391 = dma.done [#allocation4], 256
    $region21: #{attention_head.1} parent=1 // pred_fallthru
      _
    %392 = vsyncpa [#allocation3], 1
    %393 = vsyncpa [#allocation4], 1

</llo_original>
